<compile_context>
chip_gen: v7x
topology: tpu7x:2x2x1
jax: 0.10.0
libtpu: 0.0.40
codegen_flags: <defaults>
</compile_context>

<pallas_src>
import math

import jax
import jax.numpy as jnp
from jax.experimental import pallas as pl
from jax.experimental.pallas import tpu as pltpu


_LANE_WIDTH = 1024          # lane-dense rows: 8 groups of 128 lanes
_SPLIT_BYTES = 1 << 20      # split across 2 grid steps only for copies >= 1 MiB


def _pallas_identity(vol):
    """Materialize `vol` via direct HBM->HBM DMA (identity on the parameter)."""
    dtype = vol.dtype
    itemsize = jnp.dtype(dtype).itemsize
    total = int(math.prod(vol.shape))
    total_bytes = total * itemsize

    # 2 chunks lets "parallel" shard the transfer across v7x's two TensorCores;
    # one chunk avoids pointless grid-step overhead for small copies.
    n_chunks = 2 if total_bytes >= _SPLIT_BYTES else 1

    # Lane-dense padded 2-D view: width a large multiple of 128, rows divisible
    # by the chunk count.  Padding only triggers for non-multiple totals.
    unit = _LANE_WIDTH * n_chunks
    padded = ((total + unit - 1) // unit) * unit
    flat = vol.reshape(-1)
    if padded != total:
        flat = jnp.pad(flat, (0, padded - total))
    rows = padded // _LANE_WIDTH
    chunk_rows = rows // n_chunks
    flat2 = flat.reshape(rows, _LANE_WIDTH)

    def kernel(src_ref, dst_ref, sem):
        # One big HBM->HBM DMA per grid step; no VMEM round trip.
        start = pl.program_id(0) * chunk_rows
        cp = pltpu.make_async_copy(
            src_ref.at[pl.ds(start, chunk_rows), :],
            dst_ref.at[pl.ds(start, chunk_rows), :],
            sem,
        )
        cp.start()
        cp.wait()

    out2 = pl.pallas_call(
        kernel,
        out_shape=jax.ShapeDtypeStruct((rows, _LANE_WIDTH), dtype),
        grid_spec=pltpu.PrefetchScalarGridSpec(
            num_scalar_prefetch=0,
            grid=(n_chunks,),
            in_specs=[pl.BlockSpec(memory_space=pl.ANY)],
            out_specs=pl.BlockSpec(memory_space=pl.ANY),
            scratch_shapes=[pltpu.SemaphoreType.DMA(())],
        ),
        compiler_params=pltpu.CompilerParams(
            dimension_semantics=("parallel",),
        ),
        cost_estimate=pl.CostEstimate(
            flops=0,
            transcendentals=0,
            bytes_accessed=2 * padded * itemsize,
        ),
    )(flat2)

    out_flat = out2.reshape(-1)
    if padded != total:
        out_flat = out_flat[:total]
    return out_flat.reshape(vol.shape)


class RefVolume:
    def __init__(self, volume):
        # nn.Parameter(volume) equivalent: deterministic in-script array.
        self.data = volume

    def forward(self):
        # TODO(synk): reference forward() is `exit()` (process termination, no
        # tensor math).  We implement the only meaningful kernelizable
        # semantics -- returning the stored volume parameter -- as a direct
        # HBM->HBM DMA copy; the intended grid_sample-based sampling path is
        # not present in the reference code so it is not fabricated here.
        return _pallas_identity(self.data)


if __name__ == "__main__":
    key = jax.random.PRNGKey(0)
    # Small synthetic volume consistent with a (N, C, D, H, W) feature volume.
    volume = jax.random.normal(key, (1, 4, 8, 16, 16), dtype=jnp.float32)

    module = RefVolume(volume)
    out = module.forward()
    jax.block_until_ready(out)

    assert out.shape == volume.shape
    assert out.dtype == volume.dtype
    assert bool(jnp.allclose(out, volume))
    print("KERNEL_OK")
</pallas_src>

<mosaic_0001>
module attributes {stable_mosaic.version = 11 : i64} {
  func.func @kernel(%arg0: i32, %arg1: memref<8x1024xf32, #tpu.memory_space<any>>, %arg2: memref<8x1024xf32, #tpu.memory_space<any>>, %arg3: memref<!tpu.dma_semaphore, #tpu.memory_space<semaphore_mem>>) attributes {dimension_semantics = [#tpu.dimension_semantics<parallel>], iteration_bounds = array<i64: 1>, scalar_prefetch = 0 : i64, scratch_operands = 1 : i64, tpu.core_type = #tpu.core_type<tc>, window_params = [{}, {}]} {
    %c8_i32 = arith.constant 8 : i32
    %0 = arith.muli %arg0, %c8_i32 : i32
    %c0_i32 = arith.constant 0 : i32
    %1 = tpu.memref_slice %arg1[%0, %c0_i32] : memref<8x1024xf32, #tpu.memory_space<any>> -> memref<8x1024xf32, #tpu.memory_space<any>>
    %c0_i32_0 = arith.constant 0 : i32
    %2 = tpu.memref_slice %arg2[%0, %c0_i32_0] : memref<8x1024xf32, #tpu.memory_space<any>> -> memref<8x1024xf32, #tpu.memory_space<any>>
    tpu.enqueue_dma source(%1 : memref<8x1024xf32, #tpu.memory_space<any>>) target(%2 : memref<8x1024xf32, #tpu.memory_space<any>>) target_semaphore(%arg3 : memref<!tpu.dma_semaphore, #tpu.memory_space<semaphore_mem>>)
    %c0_i32_1 = arith.constant 0 : i32
    %3 = tpu.memref_slice %arg1[%0, %c0_i32_1] : memref<8x1024xf32, #tpu.memory_space<any>> -> memref<8x1024xf32, #tpu.memory_space<any>>
    %c0_i32_2 = arith.constant 0 : i32
    %4 = tpu.memref_slice %arg2[%0, %c0_i32_2] : memref<8x1024xf32, #tpu.memory_space<any>> -> memref<8x1024xf32, #tpu.memory_space<any>>
    tpu.wait_dma2 semaphore(%arg3 : memref<!tpu.dma_semaphore, #tpu.memory_space<semaphore_mem>>) src(%3 : memref<8x1024xf32, #tpu.memory_space<any>>) dst(%4 : memref<8x1024xf32, #tpu.memory_space<any>>)
    return
  }
}

</mosaic_0001>

<llo_original>
// kernel: tpu_custom_call.1
$region0: #{tpu_custom_call.1}
  #allocation0 [shape = 'u32[]', space=smem, size = 0x4, offset = 0x4, fixed_abs, tag = 'smem constant byte address 0x4 - core index']
  #allocation1 [shape = 'u32[144,128]{1,0:T(1,128)}', space=vmem, size = 0x12000, scoped, tag = 'internal scratch']
  #allocation2 [shape = 's32[1]{0}', space=sflag, size = 0x4, scoped, tag = 'scratch operand']
  #allocation3 [shape = 's32[]', space=sflag, size = 0x4, offset = 0, fixed_abs, tag = 'sflag constant byte address 0x0 - dummy sync flag']
  #allocation4 [shape = 'u32[0]{0}', space=smem, size = 0, offset = 0, fixed_abs, tag = 'smem constant byte address 0x0 - null']
  %s0 = inlined_call_operand.hbm [shape: f32[8,1024], index: 0, kind: input, shape index: {}]
  %s1 = inlined_call_operand.hbm [shape: f32[8,1024], index: 1, kind: output, shape index: {}]
  %s2 = sld [smem:[#allocation0]]
  $region2: #{tpu_custom_call.1} parent=0
    _
  %s4 = ssub.s32 1, %s2
  %s5 = scalar_select 0, %s4, %s2
  %s6 = smul.u32 0, 8
  %s7 = sshra.s32 %s6, 3
  %s8 = sand.u32 %s6, 7
  %s9 = smul.u32 %s7, 8
  %s10 = smul.addr %s9, 128
  %s11 = scalar_lea.hbm %s0, %s10
  %s12 = smul.addr %s9, 128
  %s13 = scalar_lea.hbm %s1, %s12
  %s15 = sshll.u32 1, 14
  %s16 = sxor.u32 4294967295, %s15
  %s19 = sshll.u32 3, 24
  %s20 = sxor.u32 4294967295, %s19
  %s21 = sand.u32 0, %s20
  %s23 = sor.u32 %s21, 0
  %26 = dma.general %s11, 1024, %s13, [#allocation2], [#allocation3], [#allocation4], %s23, 0
  %s27 = smul.u32 8, 1
  %s28 = smul.u32 %s27, 8
  %s29 = sshll.u32 %s28, 4
  %30 = dma.done [#allocation2], %s29
  %31 = vsyncmov [#allocation2]
  %s32 = vpop.sfrf %31
  %p33 = scmp.eq.s32.totalorder %s32, 0
  %p34 = pneg %p33
  %36 = shalt.err (%p34)

</llo_original>
